<compile_context>
chip_gen: v5e
topology: v5e:2x2
jax: 0.10.0
libtpu: 0.0.40
codegen_flags: <defaults>
</compile_context>

<pallas_src>
import functools
import math

import jax
import jax.numpy as jnp
from jax.experimental import pallas as pl
from jax.experimental.pallas import tpu as pltpu

_SELU_ALPHA = 1.6732632423543772848170429916717
_SELU_SCALE = 1.0507009873554804934193349852946


def _selu(x):
    # SELU: scale * (x if x > 0 else alpha * (exp(x) - 1)); exp goes to the
    # EUP slot, select to the VPU -- both free while MXU/DMA are the
    # binding resources, so keep them in-kernel.
    return _SELU_SCALE * jnp.where(x > 0, x, _SELU_ALPHA * (jnp.exp(x) - 1.0))


def _round_up(x, m):
    return (x + m - 1) // m * m


def _discriminator_kernel(x_ref,            # (TB, TK)   compute dtype
                          w1_ref,           # (TK, ndf)  compute dtype
                          b1_ref,           # (1, ndf)   f32
                          w2_ref, b2_ref,   # (ndf, ndf) / (1, ndf)
                          w3_ref, b3_ref,   # (ndf, ndf) / (1, ndf)
                          w4t_ref,          # (1, ndf)   f32 (final layer as a row)
                          b4_ref,           # (1, 1)     f32
                          o_ref,            # (1, 1)     f32 output
                          h1_acc,           # (TB, ndf)  f32 scratch
                          row_acc,          # (1, ndf)   f32 scratch (batch-sum of h3)
                          *, batch_size, tb):
    i = pl.program_id(0)            # batch-tile index
    k = pl.program_id(1)            # d_in-tile index (innermost / reduction)
    nk = pl.num_programs(1)

    @pl.when(jnp.logical_and(i == 0, k == 0))
    def _():
        row_acc[...] = jnp.zeros_like(row_acc)

    @pl.when(k == 0)
    def _():
        h1_acc[...] = jnp.zeros_like(h1_acc)

    # Layer 1 partial product for this (batch tile, K tile).
    h1_acc[...] += jnp.dot(x_ref[...], w1_ref[...],
                           preferred_element_type=jnp.float32)

    @pl.when(k == nk - 1)
    def _():
        cdt = w2_ref.dtype
        h = _selu(h1_acc[...] + b1_ref[...])                               # (TB, ndf) f32
        h = _selu(jnp.dot(h.astype(cdt), w2_ref[...],
                          preferred_element_type=jnp.float32) + b2_ref[...])
        h = _selu(jnp.dot(h.astype(cdt), w3_ref[...],
                          preferred_element_type=jnp.float32) + b3_ref[...])
        # Mask out zero-padded batch rows before accumulating the batch sum.
        rows = i * tb + jax.lax.broadcasted_iota(jnp.int32, (tb, 1), 0)
        h = jnp.where(rows < batch_size, h, 0.0)
        row_acc[...] += jnp.sum(h, axis=0, keepdims=True)                  # (1, ndf)

    @pl.when(jnp.logical_and(i == pl.num_programs(0) - 1, k == nk - 1))
    def _():
        # Final Linear(ndf, 1) + batch mean, as elementwise mul + lane reduce
        # (avoids an N=1 matmul on the MXU).
        mean_h = row_acc[...] * (1.0 / batch_size)                         # (1, ndf)
        o_ref[...] = (jnp.sum(mean_h * w4t_ref[...], axis=1, keepdims=True)
                      + b4_ref[...])


def init_discriminator_params(key, nc, isize, ndf):
    """Mirror nn.Linear default init (uniform(-1/sqrt(fan_in), 1/sqrt(fan_in))).

    Weights stored as (in_features, out_features); biases as (1, out_features).
    """
    d_in = nc * isize * isize
    dims = [(d_in, ndf), (ndf, ndf), (ndf, ndf), (ndf, 1)]
    params = []
    for (fan_in, fan_out) in dims:
        key, kw, kb = jax.random.split(key, 3)
        bound = 1.0 / math.sqrt(fan_in)
        w = jax.random.uniform(kw, (fan_in, fan_out), jnp.float32, -bound, bound)
        b = jax.random.uniform(kb, (1, fan_out), jnp.float32, -bound, bound)
        params += [w, b]
    return tuple(params)


def discriminator_forward(x, params, *, compute_dtype=jnp.bfloat16):
    """x: (B, nc, isize, isize) -> (1,) float32."""
    w1, b1, w2, b2, w3, b3, w4, b4 = params
    d_in, ndf = w1.shape
    B = x.shape[0]
    x_flat = x.reshape(B, -1)                      # glue: PyTorch `.view(B, -1)`
    assert x_flat.shape[1] == d_in

    # ---- tile sizing ------------------------------------------------------
    TB = min(128, _round_up(B, 8))                 # batch tile (sublane-aligned)
    B_pad = _round_up(B, TB)
    MAX_TK = 2048                                  # keeps (TB,TK)+(TK,ndf) tiles
    TK = d_in if d_in <= MAX_TK else MAX_TK        # comfortably under scoped VMEM
    d_in_pad = _round_up(d_in, TK)

    # ---- dtype / padding glue --------------------------------------------
    xq = x_flat.astype(compute_dtype)
    if B_pad != B or d_in_pad != d_in:
        xq = jnp.pad(xq, ((0, B_pad - B), (0, d_in_pad - d_in)))
    w1q = w1.astype(compute_dtype)
    if d_in_pad != d_in:
        w1q = jnp.pad(w1q, ((0, d_in_pad - d_in), (0, 0)))
    w2q = w2.astype(compute_dtype)
    w3q = w3.astype(compute_dtype)
    w4t = w4.reshape(1, ndf).astype(jnp.float32)   # final layer kept in f32
    b1f, b2f, b3f = (b.astype(jnp.float32) for b in (b1, b2, b3))
    b4f = b4.reshape(1, 1).astype(jnp.float32)

    grid = (B_pad // TB, d_in_pad // TK)
    itemsize = jnp.dtype(compute_dtype).itemsize
    cost = pl.CostEstimate(
        flops=int(2 * B * d_in * ndf + 4 * B * ndf * ndf + 2 * B * ndf),
        transcendentals=int(3 * B * ndf),
        bytes_accessed=int((B_pad * d_in_pad + d_in_pad * ndf) * itemsize
                           + 2 * ndf * ndf * itemsize + 4 * ndf * 4 + 8),
    )

    kernel = functools.partial(_discriminator_kernel, batch_size=B, tb=TB)
    out = pl.pallas_call(
        kernel,
        out_shape=jax.ShapeDtypeStruct((1, 1), jnp.float32),
        grid_spec=pltpu.PrefetchScalarGridSpec(
            num_scalar_prefetch=0,
            grid=grid,
            in_specs=[
                pl.BlockSpec((TB, TK), lambda i, k: (i, k)),     # x tiles
                pl.BlockSpec((TK, ndf), lambda i, k: (k, 0)),    # W1 tiles
                pl.BlockSpec((1, ndf), lambda i, k: (0, 0)),     # b1
                pl.BlockSpec((ndf, ndf), lambda i, k: (0, 0)),   # W2
                pl.BlockSpec((1, ndf), lambda i, k: (0, 0)),     # b2
                pl.BlockSpec((ndf, ndf), lambda i, k: (0, 0)),   # W3
                pl.BlockSpec((1, ndf), lambda i, k: (0, 0)),     # b3
                pl.BlockSpec((1, ndf), lambda i, k: (0, 0)),     # w4 (row)
                pl.BlockSpec((1, 1), lambda i, k: (0, 0)),       # b4
            ],
            out_specs=pl.BlockSpec((1, 1), lambda i, k: (0, 0)),
            scratch_shapes=[
                pltpu.VMEM((TB, ndf), jnp.float32),              # layer-1 accumulator
                pltpu.VMEM((1, ndf), jnp.float32),               # batch-sum of h3
            ],
        ),
        # Both grid axes feed the single accumulated output -> "arbitrary".
        compiler_params=pltpu.CompilerParams(
            dimension_semantics=("arbitrary", "arbitrary")),
        cost_estimate=cost,
    )(xq, w1q, b1f, w2q, b2f, w3q, b3f, w4t, b4f)
    return out.reshape(1)                          # glue: (1,1) -> (1,)


def _reference_forward(x, params, compute_dtype=jnp.bfloat16):
    """Plain-JAX reference using the same precision path as the kernel."""
    B = x.shape[0]
    w1, b1, w2, b2, w3, b3, w4, b4 = params
    cdt = compute_dtype
    xf = x.reshape(B, -1).astype(cdt)
    h = _selu(jnp.dot(xf, w1.astype(cdt), preferred_element_type=jnp.float32) + b1)
    h = _selu(jnp.dot(h.astype(cdt), w2.astype(cdt),
                      preferred_element_type=jnp.float32) + b2)
    h = _selu(jnp.dot(h.astype(cdt), w3.astype(cdt),
                      preferred_element_type=jnp.float32) + b3)
    out = jnp.dot(h, w4, preferred_element_type=jnp.float32) + b4
    return jnp.mean(out, axis=0)


if __name__ == "__main__":
    # Small shapes consistent with the module (nz unused in forward).
    B, nc, isize, ndf, nz = 2, 4, 16, 32, 8

    key = jax.random.PRNGKey(0)
    key_x, key_p = jax.random.split(key)
    x = jax.random.normal(key_x, (B, nc, isize, isize), dtype=jnp.float32)
    params = init_discriminator_params(key_p, nc, isize, ndf)

    out = discriminator_forward(x, params)
    jax.block_until_ready(out)

    ref = _reference_forward(x, params)
    assert out.shape == (1,), out.shape
    assert jnp.allclose(out, ref, atol=2e-3, rtol=2e-3), (out, ref)

    print("KERNEL_OK")
</pallas_src>

<mosaic_0001>
module attributes {stable_mosaic.version = 11 : i64} {
  func.func @_discriminator_kernel(%arg0: i32, %arg1: i32, %arg2: memref<8x1024xbf16, #tpu.memory_space<vmem>>, %arg3: memref<1024x32xbf16, #tpu.memory_space<vmem>>, %arg4: memref<1x32xf32, #tpu.memory_space<vmem>>, %arg5: memref<32x32xbf16, #tpu.memory_space<vmem>>, %arg6: memref<1x32xf32, #tpu.memory_space<vmem>>, %arg7: memref<32x32xbf16, #tpu.memory_space<vmem>>, %arg8: memref<1x32xf32, #tpu.memory_space<vmem>>, %arg9: memref<1x32xf32, #tpu.memory_space<vmem>>, %arg10: memref<1x1xf32, #tpu.memory_space<vmem>>, %arg11: memref<1x1xf32, #tpu.memory_space<vmem>>, %arg12: memref<8x32xf32, #tpu.memory_space<vmem>>, %arg13: memref<1x32xf32, #tpu.memory_space<vmem>>) attributes {dimension_semantics = [#tpu.dimension_semantics<arbitrary>, #tpu.dimension_semantics<arbitrary>], iteration_bounds = array<i64: 1, 1>, scalar_prefetch = 0 : i64, scratch_operands = 2 : i64, tpu.core_type = #tpu.core_type<tc>, window_params = [{transform_indices = @transform_0, window_bounds = array<i64: 8, 1024>}, {transform_indices = @transform_1, window_bounds = array<i64: 1024, 32>}, {pipeline_mode = #tpu.pipeline_mode<synchronous>, transform_indices = @transform_2, window_bounds = array<i64: 1, 32>}, {pipeline_mode = #tpu.pipeline_mode<synchronous>, transform_indices = @transform_3, window_bounds = array<i64: 32, 32>}, {pipeline_mode = #tpu.pipeline_mode<synchronous>, transform_indices = @transform_4, window_bounds = array<i64: 1, 32>}, {pipeline_mode = #tpu.pipeline_mode<synchronous>, transform_indices = @transform_5, window_bounds = array<i64: 32, 32>}, {pipeline_mode = #tpu.pipeline_mode<synchronous>, transform_indices = @transform_6, window_bounds = array<i64: 1, 32>}, {pipeline_mode = #tpu.pipeline_mode<synchronous>, transform_indices = @transform_7, window_bounds = array<i64: 1, 32>}, {pipeline_mode = #tpu.pipeline_mode<synchronous>, transform_indices = @transform_8, window_bounds = array<i64: 1, 1>}, {pipeline_mode = #tpu.pipeline_mode<synchronous>, transform_indices = @transform_9, window_bounds = array<i64: 1, 1>}]} {
    %c0_i32 = arith.constant 0 : i32
    %0 = arith.cmpi eq, %arg0, %c0_i32 : i32
    %c0_i32_0 = arith.constant 0 : i32
    %1 = arith.cmpi eq, %arg1, %c0_i32_0 : i32
    %2 = arith.andi %0, %1 : i1
    %3 = arith.extui %2 : i1 to i32
    %c0_i32_1 = arith.constant 0 : i32
    %4 = arith.cmpi ne, %3, %c0_i32_1 : i32
    scf.if %4 {
      %cst_16 = arith.constant 0.000000e+00 : f32
      %22 = vector.broadcast %cst_16 : f32 to vector<1x32xf32>
      %c0_17 = arith.constant 0 : index
      %c0_18 = arith.constant 0 : index
      %23 = vector.load %arg13[%c0_17, %c0_18] : memref<1x32xf32, #tpu.memory_space<vmem>>, vector<1x32xf32>
      tpu.vector_store %arg13[%c0_17, %c0_18], %22 {strides = array<i32>} : memref<1x32xf32, #tpu.memory_space<vmem>>, vector<1x32xf32>,
    } else {
    }
    %c0_i32_2 = arith.constant 0 : i32
    %5 = arith.cmpi eq, %arg1, %c0_i32_2 : i32
    %6 = arith.extui %5 : i1 to i32
    %c0_i32_3 = arith.constant 0 : i32
    %7 = arith.cmpi ne, %6, %c0_i32_3 : i32
    scf.if %7 {
      %cst_16 = arith.constant 0.000000e+00 : f32
      %22 = vector.broadcast %cst_16 : f32 to vector<8x32xf32>
      %c0_17 = arith.constant 0 : index
      %c0_18 = arith.constant 0 : index
      %23 = vector.load %arg12[%c0_17, %c0_18] : memref<8x32xf32, #tpu.memory_space<vmem>>, vector<8x32xf32>
      tpu.vector_store %arg12[%c0_17, %c0_18], %22 {strides = array<i32>} : memref<8x32xf32, #tpu.memory_space<vmem>>, vector<8x32xf32>,
    } else {
    }
    %c0 = arith.constant 0 : index
    %c0_4 = arith.constant 0 : index
    %8 = vector.load %arg12[%c0, %c0_4] : memref<8x32xf32, #tpu.memory_space<vmem>>, vector<8x32xf32>
    %c0_5 = arith.constant 0 : index
    %c0_6 = arith.constant 0 : index
    %9 = vector.load %arg2[%c0_5, %c0_6] : memref<8x1024xbf16, #tpu.memory_space<vmem>>, vector<8x1024xbf16>
    %c0_7 = arith.constant 0 : index
    %c0_8 = arith.constant 0 : index
    %10 = vector.load %arg3[%c0_7, %c0_8] : memref<1024x32xbf16, #tpu.memory_space<vmem>>, vector<1024x32xbf16>
    %cst = arith.constant dense<0.000000e+00> : vector<8x32xf32>
    %11 = tpu.matmul %9, %10, %cst {dimension_numbers = #tpu.dot_dimension_numbers<[1], [0], [0], [1], [0, 0, 1, 1], [], []>} : vector<8x1024xbf16>, vector<1024x32xbf16>, vector<8x32xf32> -> vector<8x32xf32>
    %12 = arith.addf %8, %11 : vector<8x32xf32>
    %c0_9 = arith.constant 0 : index
    %c0_10 = arith.constant 0 : index
    %13 = vector.load %arg12[%c0_9, %c0_10] : memref<8x32xf32, #tpu.memory_space<vmem>>, vector<8x32xf32>
    tpu.vector_store %arg12[%c0_9, %c0_10], %12 {strides = array<i32>} : memref<8x32xf32, #tpu.memory_space<vmem>>, vector<8x32xf32>,
    %c0_i32_11 = arith.constant 0 : i32
    %14 = arith.cmpi eq, %arg1, %c0_i32_11 : i32
    %15 = arith.extui %14 : i1 to i32
    %c0_i32_12 = arith.constant 0 : i32
    %16 = arith.cmpi ne, %15, %c0_i32_12 : i32
    scf.if %16 {
      %c0_16 = arith.constant 0 : index
      %c0_17 = arith.constant 0 : index
      %22 = vector.load %arg12[%c0_16, %c0_17] : memref<8x32xf32, #tpu.memory_space<vmem>>, vector<8x32xf32>
      %c0_18 = arith.constant 0 : index
      %c0_19 = arith.constant 0 : index
      %23 = vector.load %arg4[%c0_18, %c0_19] : memref<1x32xf32, #tpu.memory_space<vmem>>, vector<1x32xf32>
      %24 = vector.broadcast %23 : vector<1x32xf32> to vector<8x32xf32>
      %25 = arith.addf %22, %24 : vector<8x32xf32>
      %cst_20 = arith.constant 0.000000e+00 : f32
      %26 = vector.broadcast %cst_20 : f32 to vector<8x32xf32>
      %27 = arith.cmpf ogt, %25, %26 : vector<8x32xf32>
      %28 = math.exp %25 : vector<8x32xf32>
      %cst_21 = arith.constant 1.000000e+00 : f32
      %29 = vector.broadcast %cst_21 : f32 to vector<8x32xf32>
      %30 = arith.subf %28, %29 : vector<8x32xf32>
      %cst_22 = arith.constant 1.67326319 : f32
      %31 = vector.broadcast %cst_22 : f32 to vector<8x32xf32>
      %32 = arith.mulf %31, %30 : vector<8x32xf32>
      %33 = arith.select %27, %25, %32 : vector<8x32xi1>, vector<8x32xf32>
      %cst_23 = arith.constant 1.05070102 : f32
      %34 = vector.broadcast %cst_23 : f32 to vector<8x32xf32>
      %35 = arith.mulf %34, %33 : vector<8x32xf32>
      %36 = arith.truncf %35 : vector<8x32xf32> to vector<8x32xbf16>
      %c0_24 = arith.constant 0 : index
      %c0_25 = arith.constant 0 : index
      %37 = vector.load %arg5[%c0_24, %c0_25] : memref<32x32xbf16, #tpu.memory_space<vmem>>, vector<32x32xbf16>
      %cst_26 = arith.constant dense<0.000000e+00> : vector<8x32xf32>
      %38 = tpu.matmul %36, %37, %cst_26 {dimension_numbers = #tpu.dot_dimension_numbers<[1], [0], [0], [1], [0, 0, 1, 1], [], []>} : vector<8x32xbf16>, vector<32x32xbf16>, vector<8x32xf32> -> vector<8x32xf32>
      %c0_27 = arith.constant 0 : index
      %c0_28 = arith.constant 0 : index
      %39 = vector.load %arg6[%c0_27, %c0_28] : memref<1x32xf32, #tpu.memory_space<vmem>>, vector<1x32xf32>
      %40 = vector.broadcast %39 : vector<1x32xf32> to vector<8x32xf32>
      %41 = arith.addf %38, %40 : vector<8x32xf32>
      %cst_29 = arith.constant 0.000000e+00 : f32
      %42 = vector.broadcast %cst_29 : f32 to vector<8x32xf32>
      %43 = arith.cmpf ogt, %41, %42 : vector<8x32xf32>
      %44 = math.exp %41 : vector<8x32xf32>
      %cst_30 = arith.constant 1.000000e+00 : f32
      %45 = vector.broadcast %cst_30 : f32 to vector<8x32xf32>
      %46 = arith.subf %44, %45 : vector<8x32xf32>
      %cst_31 = arith.constant 1.67326319 : f32
      %47 = vector.broadcast %cst_31 : f32 to vector<8x32xf32>
      %48 = arith.mulf %47, %46 : vector<8x32xf32>
      %49 = arith.select %43, %41, %48 : vector<8x32xi1>, vector<8x32xf32>
      %cst_32 = arith.constant 1.05070102 : f32
      %50 = vector.broadcast %cst_32 : f32 to vector<8x32xf32>
      %51 = arith.mulf %50, %49 : vector<8x32xf32>
      %52 = arith.truncf %51 : vector<8x32xf32> to vector<8x32xbf16>
      %c0_33 = arith.constant 0 : index
      %c0_34 = arith.constant 0 : index
      %53 = vector.load %arg7[%c0_33, %c0_34] : memref<32x32xbf16, #tpu.memory_space<vmem>>, vector<32x32xbf16>
      %cst_35 = arith.constant dense<0.000000e+00> : vector<8x32xf32>
      %54 = tpu.matmul %52, %53, %cst_35 {dimension_numbers = #tpu.dot_dimension_numbers<[1], [0], [0], [1], [0, 0, 1, 1], [], []>} : vector<8x32xbf16>, vector<32x32xbf16>, vector<8x32xf32> -> vector<8x32xf32>
      %c0_36 = arith.constant 0 : index
      %c0_37 = arith.constant 0 : index
      %55 = vector.load %arg8[%c0_36, %c0_37] : memref<1x32xf32, #tpu.memory_space<vmem>>, vector<1x32xf32>
      %56 = vector.broadcast %55 : vector<1x32xf32> to vector<8x32xf32>
      %57 = arith.addf %54, %56 : vector<8x32xf32>
      %cst_38 = arith.constant 0.000000e+00 : f32
      %58 = vector.broadcast %cst_38 : f32 to vector<8x32xf32>
      %59 = arith.cmpf ogt, %57, %58 : vector<8x32xf32>
      %60 = math.exp %57 : vector<8x32xf32>
      %cst_39 = arith.constant 1.000000e+00 : f32
      %61 = vector.broadcast %cst_39 : f32 to vector<8x32xf32>
      %62 = arith.subf %60, %61 : vector<8x32xf32>
      %cst_40 = arith.constant 1.67326319 : f32
      %63 = vector.broadcast %cst_40 : f32 to vector<8x32xf32>
      %64 = arith.mulf %63, %62 : vector<8x32xf32>
      %65 = arith.select %59, %57, %64 : vector<8x32xi1>, vector<8x32xf32>
      %cst_41 = arith.constant 1.05070102 : f32
      %66 = vector.broadcast %cst_41 : f32 to vector<8x32xf32>
      %67 = arith.mulf %66, %65 : vector<8x32xf32>
      %c8_i32 = arith.constant 8 : i32
      %68 = arith.muli %arg0, %c8_i32 : i32
      %69 = tpu.iota {dimensions = array<i32: 0>} : vector<8x1xi32>
      %70 = vector.broadcast %68 : i32 to vector<8x1xi32>
      %71 = arith.addi %70, %69 : vector<8x1xi32>
      %c2_i32 = arith.constant 2 : i32
      %72 = vector.broadcast %c2_i32 : i32 to vector<8x1xi32>
      %73 = arith.cmpi slt, %71, %72 : vector<8x1xi32>
      %cst_42 = arith.constant 0.000000e+00 : f32
      %74 = vector.shape_cast %73 : vector<8x1xi1> to vector<8x1xi1>
      %75 = vector.broadcast %74 : vector<8x1xi1> to vector<8x32xi1>
      %76 = vector.broadcast %cst_42 : f32 to vector<8x32xf32>
      %77 = arith.select %75, %67, %76 : vector<8x32xi1>, vector<8x32xf32>
      %c0_43 = arith.constant 0 : index
      %c0_44 = arith.constant 0 : index
      %78 = vector.load %arg13[%c0_43, %c0_44] : memref<1x32xf32, #tpu.memory_space<vmem>>, vector<1x32xf32>
      %cst_45 = arith.constant dense<0.000000e+00> : vector<32xf32>
      %79 = vector.multi_reduction <add>, %77, %cst_45 [0] : vector<8x32xf32> to vector<32xf32>
      %80 = vector.shape_cast %79 : vector<32xf32> to vector<1x32xf32>
      %81 = arith.addf %78, %80 : vector<1x32xf32>
      %c0_46 = arith.constant 0 : index
      %c0_47 = arith.constant 0 : index
      %82 = vector.load %arg13[%c0_46, %c0_47] : memref<1x32xf32, #tpu.memory_space<vmem>>, vector<1x32xf32>
      tpu.vector_store %arg13[%c0_46, %c0_47], %81 {strides = array<i32>} : memref<1x32xf32, #tpu.memory_space<vmem>>, vector<1x32xf32>,
    } else {
    }
    %c0_i32_13 = arith.constant 0 : i32
    %17 = arith.cmpi eq, %arg0, %c0_i32_13 : i32
    %c0_i32_14 = arith.constant 0 : i32
    %18 = arith.cmpi eq, %arg1, %c0_i32_14 : i32
    %19 = arith.andi %17, %18 : i1
    %20 = arith.extui %19 : i1 to i32
    %c0_i32_15 = arith.constant 0 : i32
    %21 = arith.cmpi ne, %20, %c0_i32_15 : i32
    scf.if %21 {
      %c0_16 = arith.constant 0 : index
      %c0_17 = arith.constant 0 : index
      %22 = vector.load %arg13[%c0_16, %c0_17] : memref<1x32xf32, #tpu.memory_space<vmem>>, vector<1x32xf32>
      %cst_18 = arith.constant 5.000000e-01 : f32
      %23 = vector.broadcast %cst_18 : f32 to vector<1x32xf32>
      %24 = arith.mulf %22, %23 : vector<1x32xf32>
      %c0_19 = arith.constant 0 : index
      %c0_20 = arith.constant 0 : index
      %25 = vector.load %arg9[%c0_19, %c0_20] : memref<1x32xf32, #tpu.memory_space<vmem>>, vector<1x32xf32>
      %26 = arith.mulf %24, %25 : vector<1x32xf32>
      %cst_21 = arith.constant dense<0.000000e+00> : vector<1xf32>
      %27 = vector.multi_reduction <add>, %26, %cst_21 [1] : vector<1x32xf32> to vector<1xf32>
      %28 = vector.shape_cast %27 : vector<1xf32> to vector<1x1xf32>
      %c0_22 = arith.constant 0 : index
      %c0_23 = arith.constant 0 : index
      %29 = vector.load %arg10[%c0_22, %c0_23] : memref<1x1xf32, #tpu.memory_space<vmem>>, vector<1x1xf32>
      %30 = arith.addf %28, %29 : vector<1x1xf32>
      %c0_24 = arith.constant 0 : index
      %c0_25 = arith.constant 0 : index
      %31 = vector.load %arg11[%c0_24, %c0_25] : memref<1x1xf32, #tpu.memory_space<vmem>>, vector<1x1xf32>
      tpu.vector_store %arg11[%c0_24, %c0_25], %30 {strides = array<i32>} : memref<1x1xf32, #tpu.memory_space<vmem>>, vector<1x1xf32>,
    } else {
    }
    return
  }
  func.func @transform_0(%arg0: i32, %arg1: i32) -> (i32, i32) {
    %c0_i32 = arith.constant 0 : i32
    return %arg0, %arg1 : i32, i32
  }
  func.func @transform_1(%arg0: i32, %arg1: i32) -> (i32, i32) {
    %c0_i32 = arith.constant 0 : i32
    %c0_i32_0 = arith.constant 0 : i32
    return %arg1, %c0_i32 : i32, i32
  }
  func.func @transform_2(%arg0: i32, %arg1: i32) -> (i32, i32) {
    %c0_i32 = arith.constant 0 : i32
    %c0_i32_0 = arith.constant 0 : i32
    %c0_i32_1 = arith.constant 0 : i32
    return %c0_i32, %c0_i32_0 : i32, i32
  }
  func.func @transform_3(%arg0: i32, %arg1: i32) -> (i32, i32) {
    %c0_i32 = arith.constant 0 : i32
    %c0_i32_0 = arith.constant 0 : i32
    %c0_i32_1 = arith.constant 0 : i32
    return %c0_i32, %c0_i32_0 : i32, i32
  }
  func.func @transform_4(%arg0: i32, %arg1: i32) -> (i32, i32) {
    %c0_i32 = arith.constant 0 : i32
    %c0_i32_0 = arith.constant 0 : i32
    %c0_i32_1 = arith.constant 0 : i32
    return %c0_i32, %c0_i32_0 : i32, i32
  }
  func.func @transform_5(%arg0: i32, %arg1: i32) -> (i32, i32) {
    %c0_i32 = arith.constant 0 : i32
    %c0_i32_0 = arith.constant 0 : i32
    %c0_i32_1 = arith.constant 0 : i32
    return %c0_i32, %c0_i32_0 : i32, i32
  }
  func.func @transform_6(%arg0: i32, %arg1: i32) -> (i32, i32) {
    %c0_i32 = arith.constant 0 : i32
    %c0_i32_0 = arith.constant 0 : i32
    %c0_i32_1 = arith.constant 0 : i32
    return %c0_i32, %c0_i32_0 : i32, i32
  }
  func.func @transform_7(%arg0: i32, %arg1: i32) -> (i32, i32) {
    %c0_i32 = arith.constant 0 : i32
    %c0_i32_0 = arith.constant 0 : i32
    %c0_i32_1 = arith.constant 0 : i32
    return %c0_i32, %c0_i32_0 : i32, i32
  }
  func.func @transform_8(%arg0: i32, %arg1: i32) -> (i32, i32) {
    %c0_i32 = arith.constant 0 : i32
    %c0_i32_0 = arith.constant 0 : i32
    %c0_i32_1 = arith.constant 0 : i32
    return %c0_i32, %c0_i32_0 : i32, i32
  }
  func.func @transform_9(%arg0: i32, %arg1: i32) -> (i32, i32) {
    %c0_i32 = arith.constant 0 : i32
    %c0_i32_0 = arith.constant 0 : i32
    %c0_i32_1 = arith.constant 0 : i32
    return %c0_i32, %c0_i32_0 : i32, i32
  }
}

</mosaic_0001>

<llo_original>
// kernel: tpu_custom_call.1
$region0: #{tpu_custom_call.1}
  #allocation0 [shape = 'u32[]', space=smem, size = 0x4, offset = 0x4, fixed_abs, tag = 'smem constant byte address 0x4 - core index']
  #allocation1 [shape = 'u32[72,128]{1,0:T(1,128)}', space=vmem, size = 0x9000, scoped, tag = 'internal scratch']
  #allocation2 [shape = 'f32[8,32]{1,0:T(8,128)}', space=vmem, size = 0x1000, scoped, tag = 'scratch operand']
  #allocation3 [shape = 'f32[1,32]{1,0:T(1,128)}', space=vmem, size = 0x200, scoped, tag = 'scratch operand']
  #allocation4 [shape = 'f32[1,1]{1,0:T(1,128)S(1)}', space=vmem, size = 0x200, scoped, tag = 'scoped memory for tpu_custom_call.1']
  %s0 = inlined_call_operand.vmem [shape: bf16[8,1024], index: 0, kind: input, shape index: {}]
  %s1 = inlined_call_operand.vmem [shape: bf16[1024,32], index: 1, kind: input, shape index: {}]
  %s2 = inlined_call_operand.vmem [shape: f32[1,32], index: 2, kind: input, shape index: {}]
  %s3 = inlined_call_operand.vmem [shape: bf16[32,32], index: 3, kind: input, shape index: {}]
  %s4 = inlined_call_operand.vmem [shape: f32[1,32], index: 4, kind: input, shape index: {}]
  %s5 = inlined_call_operand.vmem [shape: bf16[32,32], index: 5, kind: input, shape index: {}]
  %s6 = inlined_call_operand.vmem [shape: f32[1,32], index: 6, kind: input, shape index: {}]
  %s7 = inlined_call_operand.vmem [shape: f32[1,32], index: 7, kind: input, shape index: {}]
  %s8 = inlined_call_operand.<no memory space> [shape: f32[1,1], index: 8, kind: input, shape index: {}]
  %s9 = inlined_call_operand.hbm [shape: f32[1,1], index: 9, kind: output, shape index: {}]
  %s10 = sld [smem:[#allocation0]]
  $region62: #{tpu_custom_call.1} parent=0
    _
  %s12 = ssub.s32 1, %s10
  %s13 = scalar_select 0, %s12, %s10
  %v14 = vstv %s8
  %15 = vst [vmem:[#allocation4] sm:$0x1] %v14
  $region1: #{tpu_custom_call.1} parent=0
    #allocation5 [shape = 'u8[512]{0}', space=vmem, size = 0x400, scoped, tag = 'output window, operand 0, single buffered']
    #allocation6 [shape = 's32[1]{0}', space=sflag, size = 0x4, scoped, tag = 'scoped memory for tpu_custom_call.1']
    %16 = vsyncpa [#allocation6], 0
    // Predicated region
    $region2: #{tpu_custom_call.1} parent=1 // pred_check
      _
    $region3: #{tpu_custom_call.1} parent=1 // pred_check_branch
      %18 = sbr.rel (0) target = $region5
    $region4: #{tpu_custom_call.1} parent=1 // pred_region
      _
    $region5: #{tpu_custom_call.1} parent=1 // pred_fallthru
      _
    // Predicated region
    $region6: #{tpu_custom_call.1} parent=1 // pred_check
      _
    $region7: #{tpu_custom_call.1} parent=1 // pred_check_branch
      %20 = sbr.rel (0) target = $region9
    $region8: #{tpu_custom_call.1} parent=1 // pred_region
      _
    $region9: #{tpu_custom_call.1} parent=1 // pred_fallthru
      _
    // Predicated region
    $region10: #{tpu_custom_call.1} parent=1 // pred_check
      _
    $region11: #{tpu_custom_call.1} parent=1 // pred_check_branch
      %22 = sbr.rel (0) target = $region13
    $region12: #{tpu_custom_call.1} parent=1 // pred_region
      _
    $region13: #{tpu_custom_call.1} parent=1 // pred_fallthru
      _
    // Predicated region
    $region14: #{tpu_custom_call.1} parent=1 // pred_check
      _
    $region15: #{tpu_custom_call.1} parent=1 // pred_check_branch
      %24 = sbr.rel (0) target = $region17
    $region16: #{tpu_custom_call.1} parent=1 // pred_region
      _
    $region17: #{tpu_custom_call.1} parent=1 // pred_fallthru
      _
    // Predicated region
    $region18: #{tpu_custom_call.1} parent=1 // pred_check
      _
    $region19: #{tpu_custom_call.1} parent=1 // pred_check_branch
      %26 = sbr.rel (0) target = $region21
    $region20: #{tpu_custom_call.1} parent=1 // pred_region
      _
    $region21: #{tpu_custom_call.1} parent=1 // pred_fallthru
      _
    // Predicated region
    $region22: #{tpu_custom_call.1} parent=1 // pred_check
      _
    $region23: #{tpu_custom_call.1} parent=1 // pred_check_branch
      %28 = sbr.rel (0) target = $region25
    $region24: #{tpu_custom_call.1} parent=1 // pred_region
      _
    $region25: #{tpu_custom_call.1} parent=1 // pred_fallthru
      _
    // Predicated region
    $region26: #{tpu_custom_call.1} parent=1 // pred_check
      _
    $region27: #{tpu_custom_call.1} parent=1 // pred_check_branch
      %30 = sbr.rel (0) target = $region29
    $region28: #{tpu_custom_call.1} parent=1 // pred_region
      _
    $region29: #{tpu_custom_call.1} parent=1 // pred_fallthru
      _
    // Predicated region
    $region30: #{tpu_custom_call.1} parent=1 // pred_check
      _
    $region31: #{tpu_custom_call.1} parent=1 // pred_check_branch
      %32 = sbr.rel (0) target = $region33
    $region32: #{tpu_custom_call.1} parent=1 // pred_region
      _
    $region33: #{tpu_custom_call.1} parent=1 // pred_fallthru
      _
    // Predicated region
    $region34: #{tpu_custom_call.1} parent=1 // pred_check
      _
    $region35: #{tpu_custom_call.1} parent=1 // pred_check_branch
      %34 = sbr.rel (0) target = $region37
    $region36: #{tpu_custom_call.1} parent=1 // pred_region
      _
    $region37: #{tpu_custom_call.1} parent=1 // pred_fallthru
      _
    %p36 = scmp.eq.s32.totalorder 0, 0
    %p37 = scmp.eq.s32.totalorder 0, 0
    %p38 = pnand %p36, %p37
    %p39 = pneg %p38
    // Predicated region
    $region38: #{tpu_custom_call.1} parent=1 // pred_check
      _
    $region39: #{tpu_custom_call.1} parent=1 // pred_check_branch
      %41 = sbr.rel (%p38) target = $region41
    $region40: #{tpu_custom_call.1} parent=1 // pred_region
      %vm42 = vcmask 253952
      %43 = vst.msk [vmem:[#allocation3] sm:$0x1] %vm42, 0.0
    $region41: #{tpu_custom_call.1} parent=1 // pred_fallthru
      _
    // Predicated region
    $region42: #{tpu_custom_call.1} parent=1 // pred_check
      %p44 = pneg %p37
    $region43: #{tpu_custom_call.1} parent=1 // pred_check_branch
      %46 = sbr.rel (%p44) target = $region45
    $region44: #{tpu_custom_call.1} parent=1 // pred_region
      %vm47 = vcmask 261120
      %48 = vst.msk [vmem:[#allocation2] sm:$0xff] %vm47, 0.0
    $region45: #{tpu_custom_call.1} parent=1 // pred_fallthru
      _
    %v49 = vld [vmem:[#allocation2] sm:$0xff]
    %v50 = vld [vmem:[%s0] sm:$0xff]
    %v51 = vld [vmem:[%s0 + $0x8] sm:$0xff]
    %v52 = vld [vmem:[%s0 + $0x10] sm:$0xff]
    %v53 = vld [vmem:[%s0 + $0x18] sm:$0xff]
    %v54 = vld [vmem:[%s1] sm:$0xf]
    %v55 = vld [vmem:[%s1 + $0x4] sm:$0xf]
    %v56 = vld [vmem:[%s1 + $0x8] sm:$0xf]
    %v57 = vld [vmem:[%s1 + $0xc] sm:$0xf]
    %v58 = vld [vmem:[%s1 + $0x10] sm:$0xf]
    %v59 = vld [vmem:[%s1 + $0x14] sm:$0xf]
    %v60 = vld [vmem:[%s1 + $0x18] sm:$0xf]
    %v61 = vld [vmem:[%s1 + $0x1c] sm:$0xf]
    %v62 = vld [vmem:[%s1 + $0x20] sm:$0xf]
    %v63 = vld [vmem:[%s1 + $0x24] sm:$0xf]
    %v64 = vld [vmem:[%s1 + $0x28] sm:$0xf]
    %v65 = vld [vmem:[%s1 + $0x2c] sm:$0xf]
    %v66 = vld [vmem:[%s1 + $0x30] sm:$0xf]
    %v67 = vld [vmem:[%s1 + $0x34] sm:$0xf]
    %v68 = vld [vmem:[%s1 + $0x38] sm:$0xf]
    %v69 = vld [vmem:[%s1 + $0x3c] sm:$0xf]
    %v70 = vld [vmem:[%s1 + $0x40] sm:$0xf]
    %v71 = vld [vmem:[%s1 + $0x44] sm:$0xf]
    %v72 = vld [vmem:[%s1 + $0x48] sm:$0xf]
    %v73 = vld [vmem:[%s1 + $0x4c] sm:$0xf]
    %v74 = vld [vmem:[%s1 + $0x50] sm:$0xf]
    %v75 = vld [vmem:[%s1 + $0x54] sm:$0xf]
    %v76 = vld [vmem:[%s1 + $0x58] sm:$0xf]
    %v77 = vld [vmem:[%s1 + $0x5c] sm:$0xf]
    %v78 = vld [vmem:[%s1 + $0x60] sm:$0xf]
    %v79 = vld [vmem:[%s1 + $0x64] sm:$0xf]
    %v80 = vld [vmem:[%s1 + $0x68] sm:$0xf]
    %v81 = vld [vmem:[%s1 + $0x6c] sm:$0xf]
    %v82 = vld [vmem:[%s1 + $0x70] sm:$0xf]
    %v83 = vld [vmem:[%s1 + $0x74] sm:$0xf]
    %v84 = vld [vmem:[%s1 + $0x78] sm:$0xf]
    %v85 = vld [vmem:[%s1 + $0x7c] sm:$0xf]
    %v86 = vld [vmem:[%s1 + $0x80] sm:$0xf]
    %v87 = vld [vmem:[%s1 + $0x84] sm:$0xf]
    %v88 = vld [vmem:[%s1 + $0x88] sm:$0xf]
    %v89 = vld [vmem:[%s1 + $0x8c] sm:$0xf]
    %v90 = vld [vmem:[%s1 + $0x90] sm:$0xf]
    %v91 = vld [vmem:[%s1 + $0x94] sm:$0xf]
    %v92 = vld [vmem:[%s1 + $0x98] sm:$0xf]
    %v93 = vld [vmem:[%s1 + $0x9c] sm:$0xf]
    %v94 = vld [vmem:[%s1 + $0xa0] sm:$0xf]
    %v95 = vld [vmem:[%s1 + $0xa4] sm:$0xf]
    %v96 = vld [vmem:[%s1 + $0xa8] sm:$0xf]
    %v97 = vld [vmem:[%s1 + $0xac] sm:$0xf]
    %v98 = vld [vmem:[%s1 + $0xb0] sm:$0xf]
    %v99 = vld [vmem:[%s1 + $0xb4] sm:$0xf]
    %v100 = vld [vmem:[%s1 + $0xb8] sm:$0xf]
    %v101 = vld [vmem:[%s1 + $0xbc] sm:$0xf]
    %v102 = vld [vmem:[%s1 + $0xc0] sm:$0xf]
    %v103 = vld [vmem:[%s1 + $0xc4] sm:$0xf]
    %v104 = vld [vmem:[%s1 + $0xc8] sm:$0xf]
    %v105 = vld [vmem:[%s1 + $0xcc] sm:$0xf]
    %v106 = vld [vmem:[%s1 + $0xd0] sm:$0xf]
    %v107 = vld [vmem:[%s1 + $0xd4] sm:$0xf]
    %v108 = vld [vmem:[%s1 + $0xd8] sm:$0xf]
    %v109 = vld [vmem:[%s1 + $0xdc] sm:$0xf]
    %v110 = vld [vmem:[%s1 + $0xe0] sm:$0xf]
    %v111 = vld [vmem:[%s1 + $0xe4] sm:$0xf]
    %v112 = vld [vmem:[%s1 + $0xe8] sm:$0xf]
    %v113 = vld [vmem:[%s1 + $0xec] sm:$0xf]
    %v114 = vld [vmem:[%s1 + $0xf0] sm:$0xf]
    %v115 = vld [vmem:[%s1 + $0xf4] sm:$0xf]
    %v116 = vld [vmem:[%s1 + $0xf8] sm:$0xf]
    %v117 = vld [vmem:[%s1 + $0xfc] sm:$0xf]
    %v118 = vld [vmem:[%s1 + $0x100] sm:$0xf]
    %v119 = vld [vmem:[%s1 + $0x104] sm:$0xf]
    %v120 = vld [vmem:[%s1 + $0x108] sm:$0xf]
    %v121 = vld [vmem:[%s1 + $0x10c] sm:$0xf]
    %v122 = vld [vmem:[%s1 + $0x110] sm:$0xf]
    %v123 = vld [vmem:[%s1 + $0x114] sm:$0xf]
    %v124 = vld [vmem:[%s1 + $0x118] sm:$0xf]
    %v125 = vld [vmem:[%s1 + $0x11c] sm:$0xf]
    %v126 = vld [vmem:[%s1 + $0x120] sm:$0xf]
    %v127 = vld [vmem:[%s1 + $0x124] sm:$0xf]
    %v128 = vld [vmem:[%s1 + $0x128] sm:$0xf]
    %v129 = vld [vmem:[%s1 + $0x12c] sm:$0xf]
    %v130 = vld [vmem:[%s1 + $0x130] sm:$0xf]
    %v131 = vld [vmem:[%s1 + $0x134] sm:$0xf]
    %v132 = vld [vmem:[%s1 + $0x138] sm:$0xf]
    %v133 = vld [vmem:[%s1 + $0x13c] sm:$0xf]
    %v134 = vld [vmem:[%s1 + $0x140] sm:$0xf]
    %v135 = vld [vmem:[%s1 + $0x144] sm:$0xf]
    %v136 = vld [vmem:[%s1 + $0x148] sm:$0xf]
    %v137 = vld [vmem:[%s1 + $0x14c] sm:$0xf]
    %v138 = vld [vmem:[%s1 + $0x150] sm:$0xf]
    %v139 = vld [vmem:[%s1 + $0x154] sm:$0xf]
    %v140 = vld [vmem:[%s1 + $0x158] sm:$0xf]
    %v141 = vld [vmem:[%s1 + $0x15c] sm:$0xf]
    %v142 = vld [vmem:[%s1 + $0x160] sm:$0xf]
    %v143 = vld [vmem:[%s1 + $0x164] sm:$0xf]
    %v144 = vld [vmem:[%s1 + $0x168] sm:$0xf]
    %v145 = vld [vmem:[%s1 + $0x16c] sm:$0xf]
    %v146 = vld [vmem:[%s1 + $0x170] sm:$0xf]
    %v147 = vld [vmem:[%s1 + $0x174] sm:$0xf]
    %v148 = vld [vmem:[%s1 + $0x178] sm:$0xf]
    %v149 = vld [vmem:[%s1 + $0x17c] sm:$0xf]
    %v150 = vld [vmem:[%s1 + $0x180] sm:$0xf]
    %v151 = vld [vmem:[%s1 + $0x184] sm:$0xf]
    %v152 = vld [vmem:[%s1 + $0x188] sm:$0xf]
    %v153 = vld [vmem:[%s1 + $0x18c] sm:$0xf]
    %v154 = vld [vmem:[%s1 + $0x190] sm:$0xf]
    %v155 = vld [vmem:[%s1 + $0x194] sm:$0xf]
    %v156 = vld [vmem:[%s1 + $0x198] sm:$0xf]
    %v157 = vld [vmem:[%s1 + $0x19c] sm:$0xf]
    %v158 = vld [vmem:[%s1 + $0x1a0] sm:$0xf]
    %v159 = vld [vmem:[%s1 + $0x1a4] sm:$0xf]
    %v160 = vld [vmem:[%s1 + $0x1a8] sm:$0xf]
    %v161 = vld [vmem:[%s1 + $0x1ac] sm:$0xf]
    %v162 = vld [vmem:[%s1 + $0x1b0] sm:$0xf]
    %v163 = vld [vmem:[%s1 + $0x1b4] sm:$0xf]
    %v164 = vld [vmem:[%s1 + $0x1b8] sm:$0xf]
    %v165 = vld [vmem:[%s1 + $0x1bc] sm:$0xf]
    %v166 = vld [vmem:[%s1 + $0x1c0] sm:$0xf]
    %v167 = vld [vmem:[%s1 + $0x1c4] sm:$0xf]
    %v168 = vld [vmem:[%s1 + $0x1c8] sm:$0xf]
    %v169 = vld [vmem:[%s1 + $0x1cc] sm:$0xf]
    %v170 = vld [vmem:[%s1 + $0x1d0] sm:$0xf]
    %v171 = vld [vmem:[%s1 + $0x1d4] sm:$0xf]
    %v172 = vld [vmem:[%s1 + $0x1d8] sm:$0xf]
    %v173 = vld [vmem:[%s1 + $0x1dc] sm:$0xf]
    %v174 = vld [vmem:[%s1 + $0x1e0] sm:$0xf]
    %v175 = vld [vmem:[%s1 + $0x1e4] sm:$0xf]
    %v176 = vld [vmem:[%s1 + $0x1e8] sm:$0xf]
    %v177 = vld [vmem:[%s1 + $0x1ec] sm:$0xf]
    %v178 = vld [vmem:[%s1 + $0x1f0] sm:$0xf]
    %v179 = vld [vmem:[%s1 + $0x1f4] sm:$0xf]
    %v180 = vld [vmem:[%s1 + $0x1f8] sm:$0xf]
    %v181 = vld [vmem:[%s1 + $0x1fc] sm:$0xf]
    %v186 = vunpack.c.l.b16 %v50
    %v187 = vunpack.c.h.b16 %v50
    %v188 = vunpack.c.l.b16 %v51
    %v189 = vunpack.c.h.b16 %v51
    %v190 = vunpack.c.l.b16 %v52
    %v191 = vunpack.c.h.b16 %v52
    %v192 = vunpack.c.l.b16 %v53
    %v193 = vunpack.c.h.b16 %v53
    %v194 = vpack.c.b16 %v186, %v186
    %v195 = vpack.c.b16 %v187, %v187
    %v196 = vpack.c.b16 %v188, %v188
    %v197 = vpack.c.b16 %v189, %v189
    %v198 = vpack.c.b16 %v190, %v190
    %v199 = vpack.c.b16 %v191, %v191
    %v200 = vpack.c.b16 %v192, %v192
    %v201 = vpack.c.b16 %v193, %v193
    %v338 = vunpack.c.l.b16 %v54
    %v339 = vunpack.c.l.b16 %v55
    %v340 = vunpack.c.l.b16 %v56
    %v341 = vunpack.c.l.b16 %v57
    %v342 = vunpack.c.l.b16 %v58
    %v343 = vunpack.c.l.b16 %v59
    %v344 = vunpack.c.l.b16 %v60
    %v345 = vunpack.c.l.b16 %v61
    %v346 = vunpack.c.l.b16 %v62
    %v347 = vunpack.c.l.b16 %v63
    %v348 = vunpack.c.l.b16 %v64
    %v349 = vunpack.c.l.b16 %v65
    %v350 = vunpack.c.l.b16 %v66
    %v351 = vunpack.c.l.b16 %v67
    %v352 = vunpack.c.l.b16 %v68
    %v353 = vunpack.c.l.b16 %v69
    %v354 = vunpack.c.l.b16 %v70
    %v355 = vunpack.c.l.b16 %v71
    %v356 = vunpack.c.l.b16 %v72
    %v357 = vunpack.c.l.b16 %v73
    %v358 = vunpack.c.l.b16 %v74
    %v359 = vunpack.c.l.b16 %v75
    %v360 = vunpack.c.l.b16 %v76
    %v361 = vunpack.c.l.b16 %v77
    %v362 = vunpack.c.l.b16 %v78
    %v363 = vunpack.c.l.b16 %v79
    %v364 = vunpack.c.l.b16 %v80
    %v365 = vunpack.c.l.b16 %v81
    %v366 = vunpack.c.l.b16 %v82
    %v367 = vunpack.c.l.b16 %v83
    %v368 = vunpack.c.l.b16 %v84
    %v369 = vunpack.c.l.b16 %v85
    %v370 = vunpack.c.l.b16 %v86
    %v371 = vunpack.c.l.b16 %v87
    %v372 = vunpack.c.l.b16 %v88
    %v373 = vunpack.c.l.b16 %v89
    %v374 = vunpack.c.l.b16 %v90
    %v375 = vunpack.c.l.b16 %v91
    %v376 = vunpack.c.l.b16 %v92
    %v377 = vunpack.c.l.b16 %v93
    %v378 = vunpack.c.l.b16 %v94
    %v379 = vunpack.c.l.b16 %v95
    %v380 = vunpack.c.l.b16 %v96
    %v381 = vunpack.c.l.b16 %v97
    %v382 = vunpack.c.l.b16 %v98
    %v383 = vunpack.c.l.b16 %v99
    %v384 = vunpack.c.l.b16 %v100
    %v385 = vunpack.c.l.b16 %v101
    %v386 = vunpack.c.l.b16 %v102
    %v387 = vunpack.c.l.b16 %v103
    %v388 = vunpack.c.l.b16 %v104
    %v389 = vunpack.c.l.b16 %v105
    %v390 = vunpack.c.l.b16 %v106
    %v391 = vunpack.c.l.b16 %v107
    %v392 = vunpack.c.l.b16 %v108
    %v393 = vunpack.c.l.b16 %v109
    %v394 = vunpack.c.l.b16 %v110
    %v395 = vunpack.c.l.b16 %v111
    %v396 = vunpack.c.l.b16 %v112
    %v397 = vunpack.c.l.b16 %v113
    %v398 = vunpack.c.l.b16 %v114
    %v399 = vunpack.c.l.b16 %v115
    %v400 = vunpack.c.l.b16 %v116
    %v401 = vunpack.c.l.b16 %v117
    %v402 = vunpack.c.l.b16 %v118
    %v403 = vunpack.c.l.b16 %v119
    %v404 = vunpack.c.l.b16 %v120
    %v405 = vunpack.c.l.b16 %v121
    %v406 = vunpack.c.l.b16 %v122
    %v407 = vunpack.c.l.b16 %v123
    %v408 = vunpack.c.l.b16 %v124
    %v409 = vunpack.c.l.b16 %v125
    %v410 = vunpack.c.l.b16 %v126
    %v411 = vunpack.c.l.b16 %v127
    %v412 = vunpack.c.l.b16 %v128
    %v413 = vunpack.c.l.b16 %v129
    %v414 = vunpack.c.l.b16 %v130
    %v415 = vunpack.c.l.b16 %v131
    %v416 = vunpack.c.l.b16 %v132
    %v417 = vunpack.c.l.b16 %v133
    %v418 = vunpack.c.l.b16 %v134
    %v419 = vunpack.c.l.b16 %v135
    %v420 = vunpack.c.l.b16 %v136
    %v421 = vunpack.c.l.b16 %v137
    %v422 = vunpack.c.l.b16 %v138
    %v423 = vunpack.c.l.b16 %v139
    %v424 = vunpack.c.l.b16 %v140
    %v425 = vunpack.c.l.b16 %v141
    %v426 = vunpack.c.l.b16 %v142
    %v427 = vunpack.c.l.b16 %v143
    %v428 = vunpack.c.l.b16 %v144
    %v429 = vunpack.c.l.b16 %v145
    %v430 = vunpack.c.l.b16 %v146
    %v431 = vunpack.c.l.b16 %v147
    %v432 = vunpack.c.l.b16 %v148
    %v433 = vunpack.c.l.b16 %v149
    %v434 = vunpack.c.l.b16 %v150
    %v435 = vunpack.c.l.b16 %v151
    %v436 = vunpack.c.l.b16 %v152
    %v437 = vunpack.c.l.b16 %v153
    %v438 = vunpack.c.l.b16 %v154
    %v439 = vunpack.c.l.b16 %v155
    %v440 = vunpack.c.l.b16 %v156
    %v441 = vunpack.c.l.b16 %v157
    %v442 = vunpack.c.l.b16 %v158
    %v443 = vunpack.c.l.b16 %v159
    %v444 = vunpack.c.l.b16 %v160
    %v445 = vunpack.c.l.b16 %v161
    %v446 = vunpack.c.l.b16 %v162
    %v447 = vunpack.c.l.b16 %v163
    %v448 = vunpack.c.l.b16 %v164
    %v449 = vunpack.c.l.b16 %v165
    %v450 = vunpack.c.l.b16 %v166
    %v451 = vunpack.c.l.b16 %v167
    %v452 = vunpack.c.l.b16 %v168
    %v453 = vunpack.c.l.b16 %v169
    %v454 = vunpack.c.l.b16 %v170
    %v455 = vunpack.c.l.b16 %v171
    %v456 = vunpack.c.l.b16 %v172
    %v457 = vunpack.c.l.b16 %v173
    %v458 = vunpack.c.l.b16 %v174
    %v459 = vunpack.c.l.b16 %v175
    %v460 = vunpack.c.l.b16 %v176
    %v461 = vunpack.c.l.b16 %v177
    %v462 = vunpack.c.l.b16 %v178
    %v463 = vunpack.c.l.b16 %v179
    %v464 = vunpack.c.l.b16 %v180
    %v465 = vunpack.c.l.b16 %v181
    %v466 = vpack.c.b16 %v339, %v338
    %v467 = vpack.c.b16 %v341, %v340
    %v468 = vpack.c.b16 %v343, %v342
    %v469 = vpack.c.b16 %v345, %v344
    %v470 = vpack.c.b16 %v347, %v346
    %v471 = vpack.c.b16 %v349, %v348
    %v472 = vpack.c.b16 %v351, %v350
    %v473 = vpack.c.b16 %v353, %v352
    %v474 = vpack.c.b16 %v355, %v354
    %v475 = vpack.c.b16 %v357, %v356
    %v476 = vpack.c.b16 %v359, %v358
    %v477 = vpack.c.b16 %v361, %v360
    %v478 = vpack.c.b16 %v363, %v362
    %v479 = vpack.c.b16 %v365, %v364
    %v480 = vpack.c.b16 %v367, %v366
    %v481 = vpack.c.b16 %v369, %v368
    %v482 = vpack.c.b16 %v371, %v370
    %v483 = vpack.c.b16 %v373, %v372
    %v484 = vpack.c.b16 %v375, %v374
    %v485 = vpack.c.b16 %v377, %v376
    %v486 = vpack.c.b16 %v379, %v378
    %v487 = vpack.c.b16 %v381, %v380
    %v488 = vpack.c.b16 %v383, %v382
    %v489 = vpack.c.b16 %v385, %v384
    %v490 = vpack.c.b16 %v387, %v386
    %v491 = vpack.c.b16 %v389, %v388
    %v492 = vpack.c.b16 %v391, %v390
    %v493 = vpack.c.b16 %v393, %v392
    %v494 = vpack.c.b16 %v395, %v394
    %v495 = vpack.c.b16 %v397, %v396
    %v496 = vpack.c.b16 %v399, %v398
    %v497 = vpack.c.b16 %v401, %v400
    %v498 = vpack.c.b16 %v403, %v402
    %v499 = vpack.c.b16 %v405, %v404
    %v500 = vpack.c.b16 %v407, %v406
    %v501 = vpack.c.b16 %v409, %v408
    %v502 = vpack.c.b16 %v411, %v410
    %v503 = vpack.c.b16 %v413, %v412
    %v504 = vpack.c.b16 %v415, %v414
    %v505 = vpack.c.b16 %v417, %v416
    %v506 = vpack.c.b16 %v419, %v418
    %v507 = vpack.c.b16 %v421, %v420
    %v508 = vpack.c.b16 %v423, %v422
    %v509 = vpack.c.b16 %v425, %v424
    %v510 = vpack.c.b16 %v427, %v426
    %v511 = vpack.c.b16 %v429, %v428
    %v512 = vpack.c.b16 %v431, %v430
    %v513 = vpack.c.b16 %v433, %v432
    %v514 = vpack.c.b16 %v435, %v434
    %v515 = vpack.c.b16 %v437, %v436
    %v516 = vpack.c.b16 %v439, %v438
    %v517 = vpack.c.b16 %v441, %v440
    %v518 = vpack.c.b16 %v443, %v442
    %v519 = vpack.c.b16 %v445, %v444
    %v520 = vpack.c.b16 %v447, %v446
    %v521 = vpack.c.b16 %v449, %v448
    %v522 = vpack.c.b16 %v451, %v450
    %v523 = vpack.c.b16 %v453, %v452
    %v524 = vpack.c.b16 %v455, %v454
    %v525 = vpack.c.b16 %v457, %v456
    %v526 = vpack.c.b16 %v459, %v458
    %v527 = vpack.c.b16 %v461, %v460
    %v528 = vpack.c.b16 %v463, %v462
    %v529 = vpack.c.b16 %v465, %v464
    %594 = vmatpush.bf16.msra.mxu0 %v473
    %595 = vmatpush.bf16.msra.mxu0 %v472
    %596 = vmatpush.bf16.msra.mxu0 %v471
    %597 = vmatpush.bf16.msra.mxu0 %v470
    %598 = vmatpush.bf16.msra.mxu0 %v469
    %599 = vmatpush.bf16.msra.mxu0 %v468
    %600 = vmatpush.bf16.msra.mxu0 %v467
    %601 = vmatpush.bf16.msra.mxu0 %v466
    %602 = vmatmul.bf16.gmra.mxu0 %v194
    %v603 = vpop.f32.mrf.mxu0
    %v604 = vadd.f32 0.0, %v603
    %v605 = vpop.f32.mrf.mxu0
    %606 = vdwg.mxu0
    %607 = vmatpush.bf16.msra.mxu0 %v481
    %608 = vmatpush.bf16.msra.mxu0 %v480
    %609 = vmatpush.bf16.msra.mxu0 %v479
    %610 = vmatpush.bf16.msra.mxu0 %v478
    %611 = vmatpush.bf16.msra.mxu0 %v477
    %612 = vmatpush.bf16.msra.mxu0 %v476
    %613 = vmatpush.bf16.msra.mxu0 %v475
    %614 = vmatpush.bf16.msra.mxu0 %v474
    %615 = vmatmul.bf16.gmra.mxu0 %v195
    %v616 = vpop.f32.mrf.mxu0
    %v617 = vadd.f32 %v604, %v616
    %v618 = vpop.f32.mrf.mxu0
    %619 = vdwg.mxu0
    %620 = vmatpush.bf16.msra.mxu0 %v489
    %621 = vmatpush.bf16.msra.mxu0 %v488
    %622 = vmatpush.bf16.msra.mxu0 %v487
    %623 = vmatpush.bf16.msra.mxu0 %v486
    %624 = vmatpush.bf16.msra.mxu0 %v485
    %625 = vmatpush.bf16.msra.mxu0 %v484
    %626 = vmatpush.bf16.msra.mxu0 %v483
    %627 = vmatpush.bf16.msra.mxu0 %v482
    %628 = vmatmul.bf16.gmra.mxu0 %v196
    %v629 = vpop.f32.mrf.mxu0
    %v630 = vadd.f32 %v617, %v629
    %v631 = vpop.f32.mrf.mxu0
    %632 = vdwg.mxu0
    %633 = vmatpush.bf16.msra.mxu0 %v497
    %634 = vmatpush.bf16.msra.mxu0 %v496
    %635 = vmatpush.bf16.msra.mxu0 %v495
    %636 = vmatpush.bf16.msra.mxu0 %v494
    %637 = vmatpush.bf16.msra.mxu0 %v493
    %638 = vmatpush.bf16.msra.mxu0 %v492
    %639 = vmatpush.bf16.msra.mxu0 %v491
    %640 = vmatpush.bf16.msra.mxu0 %v490
    %641 = vmatmul.bf16.gmra.mxu0 %v197
    %v642 = vpop.f32.mrf.mxu0
    %v643 = vadd.f32 %v630, %v642
    %v644 = vpop.f32.mrf.mxu0
    %645 = vdwg.mxu0
    %646 = vmatpush.bf16.msra.mxu0 %v505
    %647 = vmatpush.bf16.msra.mxu0 %v504
    %648 = vmatpush.bf16.msra.mxu0 %v503
    %649 = vmatpush.bf16.msra.mxu0 %v502
    %650 = vmatpush.bf16.msra.mxu0 %v501
    %651 = vmatpush.bf16.msra.mxu0 %v500
    %652 = vmatpush.bf16.msra.mxu0 %v499
    %653 = vmatpush.bf16.msra.mxu0 %v498
    %654 = vmatmul.bf16.gmra.mxu0 %v198
    %v655 = vpop.f32.mrf.mxu0
    %v656 = vadd.f32 %v643, %v655
    %v657 = vpop.f32.mrf.mxu0
    %658 = vdwg.mxu0
    %659 = vmatpush.bf16.msra.mxu0 %v513
    %660 = vmatpush.bf16.msra.mxu0 %v512
    %661 = vmatpush.bf16.msra.mxu0 %v511
    %662 = vmatpush.bf16.msra.mxu0 %v510
    %663 = vmatpush.bf16.msra.mxu0 %v509
    %664 = vmatpush.bf16.msra.mxu0 %v508
    %665 = vmatpush.bf16.msra.mxu0 %v507
    %666 = vmatpush.bf16.msra.mxu0 %v506
    %667 = vmatmul.bf16.gmra.mxu0 %v199
    %v668 = vpop.f32.mrf.mxu0
    %v669 = vadd.f32 %v656, %v668
    %v670 = vpop.f32.mrf.mxu0
    %671 = vdwg.mxu0
    %672 = vmatpush.bf16.msra.mxu0 %v521
    %673 = vmatpush.bf16.msra.mxu0 %v520
    %674 = vmatpush.bf16.msra.mxu0 %v519
    %675 = vmatpush.bf16.msra.mxu0 %v518
    %676 = vmatpush.bf16.msra.mxu0 %v517
    %677 = vmatpush.bf16.msra.mxu0 %v516
    %678 = vmatpush.bf16.msra.mxu0 %v515
    %679 = vmatpush.bf16.msra.mxu0 %v514
    %680 = vmatmul.bf16.gmra.mxu0 %v200
    %v681 = vpop.f32.mrf.mxu0
    %v682 = vadd.f32 %v669, %v681
    %v683 = vpop.f32.mrf.mxu0
    %684 = vdwg.mxu0
    %685 = vmatpush.bf16.msra.mxu0 %v529
    %686 = vmatpush.bf16.msra.mxu0 %v528
    %687 = vmatpush.bf16.msra.mxu0 %v527
    %688 = vmatpush.bf16.msra.mxu0 %v526
    %689 = vmatpush.bf16.msra.mxu0 %v525
    %690 = vmatpush.bf16.msra.mxu0 %v524
    %691 = vmatpush.bf16.msra.mxu0 %v523
    %692 = vmatpush.bf16.msra.mxu0 %v522
    %693 = vmatmul.bf16.gmra.mxu0 %v201
    %v694 = vpop.f32.mrf.mxu0
    %v695 = vadd.f32 %v682, %v694
    %v696 = vpop.f32.mrf.mxu0
    %697 = vdwg.mxu0
    %v698 = vadd.f32 %v49, %v695
    %vm699 = vcmask 261120
    %700 = vst.msk [vmem:[#allocation2] sm:$0xff] %vm699, %v698
    // Predicated region
    $region46: #{tpu_custom_call.1} parent=1 // pred_check
      %p701 = pneg %p37
    $region47: #{tpu_custom_call.1} parent=1 // pred_check_branch
      %703 = sbr.rel (%p701) target = $region49
    $region48: #{tpu_custom_call.1} parent=1 // pred_region
      %v704 = vld [vmem:[#allocation2] sm:$0xff]
      %v705 = vld [vmem:[%s2] sm:$0x1]
      %v707 = vperm.slane %v705, 0
      %v709 = vadd.f32 %v704, %v707
      %vm710 = vcmp.gt.f32.partialorder %v709, 0.0
      %v711 = vmul.f32 %v709, 1.442695
      %v712 = vpow.pop %v711
      %v713 = vsub.f32 %v712, 1.0
      %v714 = vmul.f32 %v713, 1.6732632
      %v715 = vsel %vm710, %v709, %v714
      %v716 = vmul.f32 %v715, 1.050701
      %v717 = vpack.c.bf16 %v716, %v716
      %v718 = vld [vmem:[%s3] sm:$0xf]
      %v719 = vld [vmem:[%s3 + $0x4] sm:$0xf]
      %v720 = vld [vmem:[%s3 + $0x8] sm:$0xf]
      %v721 = vld [vmem:[%s3 + $0xc] sm:$0xf]
      %v722 = vld [vmem:[%s4] sm:$0x1]
      %v724 = vperm.slane %v722, 0
      %v730 = vunpack.c.l.b16 %v718
      %v731 = vunpack.c.l.b16 %v719
      %v732 = vunpack.c.l.b16 %v720
      %v733 = vunpack.c.l.b16 %v721
      %v734 = vpack.c.b16 %v731, %v730
      %v735 = vpack.c.b16 %v733, %v732
      %v739 = vsel %vm699, %v717, 0
      %741 = vmatpush.bf16.msra.mxu0 0
      %742 = vmatpush.bf16.msra.mxu0 0
      %743 = vmatpush.bf16.msra.mxu0 0
      %744 = vmatpush.bf16.msra.mxu0 0
      %745 = vmatpush.bf16.msra.mxu0 0
      %746 = vmatpush.bf16.msra.mxu0 0
      %747 = vmatpush.bf16.msra.mxu0 %v735
      %748 = vmatpush.bf16.msra.mxu0 %v734
      %749 = vmatmul.bf16.gmra.mxu0 %v739
      %v750 = vpop.f32.mrf.mxu0
      %v751 = vadd.f32 %v724, %v750
      %v752 = vpop.f32.mrf.mxu0
      %753 = vdwg.mxu0
      %vm754 = vcmp.gt.f32.partialorder %v751, 0.0
      %v755 = vmul.f32 %v751, 1.442695
      %v756 = vpow.pop %v755
      %v757 = vsub.f32 %v756, 1.0
      %v758 = vmul.f32 %v757, 1.6732632
      %v759 = vsel %vm754, %v751, %v758
      %v760 = vmul.f32 %v759, 1.050701
      %v761 = vpack.c.bf16 %v760, %v760
      %v762 = vld [vmem:[%s5] sm:$0xf]
      %v763 = vld [vmem:[%s5 + $0x4] sm:$0xf]
      %v764 = vld [vmem:[%s5 + $0x8] sm:$0xf]
      %v765 = vld [vmem:[%s5 + $0xc] sm:$0xf]
      %v766 = vld [vmem:[%s6] sm:$0x1]
      %v768 = vperm.slane %v766, 0
      %v774 = vunpack.c.l.b16 %v762
      %v775 = vunpack.c.l.b16 %v763
      %v776 = vunpack.c.l.b16 %v764
      %v777 = vunpack.c.l.b16 %v765
      %v778 = vpack.c.b16 %v775, %v774
      %v779 = vpack.c.b16 %v777, %v776
      %v783 = vsel %vm699, %v761, 0
      %785 = vmatpush.bf16.msra.mxu0 0
      %786 = vmatpush.bf16.msra.mxu0 0
      %787 = vmatpush.bf16.msra.mxu0 0
      %788 = vmatpush.bf16.msra.mxu0 0
      %789 = vmatpush.bf16.msra.mxu0 0
      %790 = vmatpush.bf16.msra.mxu0 0
      %791 = vmatpush.bf16.msra.mxu0 %v779
      %792 = vmatpush.bf16.msra.mxu0 %v778
      %793 = vmatmul.bf16.gmra.mxu0 %v783
      %v794 = vpop.f32.mrf.mxu0
      %v795 = vadd.f32 %v768, %v794
      %v796 = vpop.f32.mrf.mxu0
      %797 = vdwg.mxu0
      %vm798 = vcmp.gt.f32.partialorder %v795, 0.0
      %v799 = vmul.f32 %v795, 1.442695
      %v800 = vpow.pop %v799
      %v801 = vsub.f32 %v800, 1.0
      %v802 = vmul.f32 %v801, 1.6732632
      %v803 = vsel %vm798, %v795, %v802
      %v804 = vmul.f32 %v803, 1.050701
      %s805 = smul.u32 0, 8
      %v806 = vlaneseq
      %v807 = vshrl.u32 %v806, 7
      %v808 = vstv %s805
      %v809 = vadd.s32 %v808, %v807
      %vm810 = vcmp.lt.s32.totalorder %v809, 2
      %v811 = vsel %vm810, 1, 0
      %vm812 = vcmp.eq.s32.totalorder %v811, 1
      %v813 = vsel %vm812, %v804, 0.0
      %v814 = vld [vmem:[#allocation3] sm:$0x1]
      %v815 = vsel %vm699, %v813, 0.0
      %v816 = vrot.slane %v815, 4
      %v817 = vadd.f32 %v815, %v816
      %v818 = vrot.slane %v817, 2
      %v819 = vadd.f32 %v817, %v818
      %v820 = vrot.slane %v819, 1
      %v821 = vadd.f32 %v819, %v820
      %v822 = vadd.f32 %v814, %v821
      %vm823 = vcmask 253952
      %824 = vst.msk [vmem:[#allocation3] sm:$0x1] %vm823, %v822
    $region49: #{tpu_custom_call.1} parent=1 // pred_fallthru
      _
    // Predicated region
    $region50: #{tpu_custom_call.1} parent=1 // pred_check
      _
    $region51: #{tpu_custom_call.1} parent=1 // pred_check_branch
      %826 = sbr.rel (%p38) target = $region53
    $region52: #{tpu_custom_call.1} parent=1 // pred_region
      %v827 = vld [vmem:[#allocation3] sm:$0x1]
      %v828 = vmul.f32 %v827, 0.5
      %v829 = vld [vmem:[%s7] sm:$0x1]
      %v830 = vmul.f32 %v828, %v829
      %vm831 = vcmask 253952
      %v832 = vsel %vm831, %v830, 0.0
      %833 = vadd.xlane.f32.xlu0 %v832
      %v834 = vpop.xlane.xlu0 %833
      %v835 = vld [vmem:[#allocation4] sm:$0x1]
      %v836 = vadd.f32 %v834, %v835
      %vm837 = vcmask 0
      %838 = vst.msk [vmem:[#allocation5] sm:$0x1] %vm837, %v836
    $region53: #{tpu_custom_call.1} parent=1 // pred_fallthru
      _
    // Predicated region
    $region54: #{tpu_custom_call.1} parent=1 // pred_check
      _
    $region55: #{tpu_custom_call.1} parent=1 // pred_check_branch
      %840 = sbr.rel (0) target = $region57
    $region56: #{tpu_custom_call.1} parent=1 // pred_region
      %842 = vsyncadd [#allocation6], 0
      %s844 = sshll.u32 [#allocation5], 4
      %s845 = int_to_ptr.vmem [resolvable:$true] %s844
      %s846 = sshll.u32 %s9, 4
      %s847 = int_to_ptr.hbm [resolvable:$true] %s846
      %849 = dma.vmem_to_hbm [thread:$0]  %s845, 16, %s847, [#allocation6]
    $region57: #{tpu_custom_call.1} parent=1 // pred_fallthru
      _
    // Predicated region
    $region58: #{tpu_custom_call.1} parent=1 // pred_check
      _
    $region59: #{tpu_custom_call.1} parent=1 // pred_check_branch
      %851 = sbr.rel (0) target = $region61
    $region60: #{tpu_custom_call.1} parent=1 // pred_region
      %853 = dma.done [#allocation6], 16
    $region61: #{tpu_custom_call.1} parent=1 // pred_fallthru
      _
    %854 = vsyncpa [#allocation6], 1

</llo_original>
